<compile_context>
chip_gen: v7x
topology: tpu7x:2x2x1
jax: 0.10.0
libtpu: 0.0.40
codegen_flags: <defaults>
</compile_context>

<pallas_src>
import functools

import jax
import jax.numpy as jnp
from jax.experimental import pallas as pl
from jax.experimental.pallas import tpu as pltpu


def _round_up(x: int, m: int) -> int:
    return ((x + m - 1) // m) * m


def dan_kernel(ids_ref, invlen_ref, tab_ref, w1_ref, b1_ref, w2_ref, b2_ref,
               out_ref, *, n_classes: int, is_prob: bool):
    ids = ids_ref[...]                               # (bB, S) int32
    bB, S = ids.shape
    Vp = tab_ref.shape[0]

    # Fused embedding gather + sum over S:
    #   counts[b, v] = #{s : ids[b, s] == v}     -> (bB, Vp)
    #   summed       = counts @ table            -> (bB, Dp)   (one MXU pass)
    # (padding_idx=0 handled by the zeroed row 0 of the table.)
    vocab_iota = jax.lax.broadcasted_iota(jnp.int32, (bB, S, Vp), 2)
    onehot = (ids[:, :, None] == vocab_iota).astype(jnp.float32)
    counts = jnp.sum(onehot, axis=1)                 # (bB, Vp)
    summed = jnp.dot(counts, tab_ref[...],
                     preferred_element_type=jnp.float32)          # (bB, Dp)
    avg = summed * invlen_ref[...]                   # out /= text_len (mul by 1/len)

    # linear1 + relu
    h = jnp.dot(avg, w1_ref[...],
                preferred_element_type=jnp.float32) + b1_ref[...]
    h = jnp.maximum(h, 0.0)

    # TODO(synk): nn.Dropout is identity in eval mode; training-time dropout
    # (random mask + 1/(1-p) scaling via pltpu.prng_*) is intentionally omitted.

    # linear2
    logits = jnp.dot(h, w2_ref[...],
                     preferred_element_type=jnp.float32) + b2_ref[...]

    if is_prob:
        # nn.Softmax() on a 2-D input defaults to dim=1.  Mask the lane-padded
        # class columns so they do not contribute to the softmax.
        col = jax.lax.broadcasted_iota(jnp.int32, logits.shape, 1)
        valid = col < n_classes
        masked = jnp.where(valid, logits, -1e30)
        m = jnp.max(masked, axis=-1, keepdims=True)
        e = jnp.where(valid, jnp.exp(masked - m), 0.0)
        denom = jnp.sum(e, axis=-1, keepdims=True)
        logits = e * pl.reciprocal(denom, approx=True)

    out_ref[...] = logits


def dan_forward(input_text, text_len, params, *, is_prob=False, block_b=256):
    """input_text: (B, S) int32 token ids; text_len: (B,) lengths."""
    emb_table, w1, b1, w2, b2 = (params["emb"], params["w1"], params["b1"],
                                 params["w2"], params["b2"])
    B, S = input_text.shape
    V, D = emb_table.shape
    H = w1.shape[1]
    C = w2.shape[1]

    # Lane-dense padding (done once in the wrapper).
    Vp = _round_up(V, 128)
    Dp = _round_up(D, 128)
    Hp = _round_up(H, 128)
    Cp = _round_up(C, 128)

    # Batch tiling: biggest block that keeps double-buffered blocks tiny;
    # 256 rows is far under the 32 MiB scoped-VMEM default on every chip gen.
    bB = min(block_b, _round_up(B, 8))
    Bp = _round_up(B, bB)

    tab_p = jnp.zeros((Vp, Dp), jnp.float32).at[:V, :D].set(
        emb_table.astype(jnp.float32))
    w1_p = jnp.zeros((Dp, Hp), jnp.float32).at[:D, :H].set(w1.astype(jnp.float32))
    b1_p = jnp.zeros((1, Hp), jnp.float32).at[:, :H].set(
        b1.reshape(1, H).astype(jnp.float32))
    w2_p = jnp.zeros((Hp, Cp), jnp.float32).at[:H, :C].set(w2.astype(jnp.float32))
    b2_p = jnp.zeros((1, Cp), jnp.float32).at[:, :C].set(
        b2.reshape(1, C).astype(jnp.float32))

    ids_p = jnp.zeros((Bp, S), jnp.int32).at[:B, :].set(input_text.astype(jnp.int32))
    # Precompute 1/len (clamped so len=0 can't divide by zero).
    inv_len = 1.0 / jnp.maximum(text_len.astype(jnp.float32), 1.0)
    inv_len_p = jnp.ones((Bp, 1), jnp.float32).at[:B, 0].set(inv_len)

    kernel = functools.partial(dan_kernel, n_classes=C, is_prob=is_prob)

    out_p = pl.pallas_call(
        kernel,
        out_shape=jax.ShapeDtypeStruct((Bp, Cp), jnp.float32),
        grid_spec=pltpu.PrefetchScalarGridSpec(
            num_scalar_prefetch=0,
            grid=(Bp // bB,),
            in_specs=[
                pl.BlockSpec((bB, S), lambda i: (i, 0)),     # token ids
                pl.BlockSpec((bB, 1), lambda i: (i, 0)),     # 1 / text_len
                pl.BlockSpec((Vp, Dp), lambda i: (0, 0)),    # emb table (resident)
                pl.BlockSpec((Dp, Hp), lambda i: (0, 0)),    # w1 (resident)
                pl.BlockSpec((1, Hp), lambda i: (0, 0)),     # b1 (resident)
                pl.BlockSpec((Hp, Cp), lambda i: (0, 0)),    # w2 (resident)
                pl.BlockSpec((1, Cp), lambda i: (0, 0)),     # b2 (resident)
            ],
            out_specs=pl.BlockSpec((bB, Cp), lambda i: (i, 0)),
        ),
        compiler_params=pltpu.CompilerParams(
            dimension_semantics=("parallel",),
            vmem_limit_bytes=32 * 1024 * 1024,
        ),
    )(ids_p, inv_len_p, tab_p, w1_p, b1_p, w2_p, b2_p)

    return out_p[:B, :C]


def init_params(key, n_classes, vocab_size, emb_dim=50, n_hidden_units=50):
    k1, k2, k3, k4, k5 = jax.random.split(key, 5)
    emb = jax.random.normal(k1, (vocab_size, emb_dim), jnp.float32) * 0.1
    emb = emb.at[0].set(0.0)  # padding_idx=0
    w1 = jax.random.normal(k2, (emb_dim, n_hidden_units), jnp.float32) * 0.1
    b1 = jax.random.normal(k3, (n_hidden_units,), jnp.float32) * 0.01
    w2 = jax.random.normal(k4, (n_hidden_units, n_classes), jnp.float32) * 0.1
    b2 = jax.random.normal(k5, (n_classes,), jnp.float32) * 0.01
    return {"emb": emb, "w1": w1, "b1": b1, "w2": w2, "b2": b2}


if __name__ == "__main__":
    key = jax.random.PRNGKey(0)
    kp, kt, kl = jax.random.split(key, 3)

    # Small shapes consistent with the module.
    n_classes = 16
    vocab_size = 100
    emb_dim = 32
    n_hidden = 32
    B, S = 8, 8

    params = init_params(kp, n_classes, vocab_size, emb_dim, n_hidden)

    input_text = jax.random.randint(kt, (B, S), 0, vocab_size, dtype=jnp.int32)
    text_len = jax.random.randint(kl, (B,), 1, S + 1, dtype=jnp.int32)

    logits = dan_forward(input_text, text_len, params, is_prob=False)
    probs = dan_forward(input_text, text_len, params, is_prob=True)
    jax.block_until_ready((logits, probs))

    # Reference check in plain JAX.
    emb = jnp.take(params["emb"], input_text, axis=0)
    avg = emb.sum(1) / text_len.reshape(B, 1).astype(jnp.float32)
    h = jnp.maximum(avg @ params["w1"] + params["b1"], 0.0)
    ref_logits = h @ params["w2"] + params["b2"]
    ref_probs = jax.nn.softmax(ref_logits, axis=1)

    assert jnp.allclose(logits, ref_logits, atol=1e-4, rtol=1e-4), \
        float(jnp.max(jnp.abs(logits - ref_logits)))
    # In-kernel softmax uses the EUP approx reciprocal -> slightly looser tol.
    assert jnp.allclose(probs, ref_probs, atol=2e-3, rtol=2e-3), \
        float(jnp.max(jnp.abs(probs - ref_probs)))

    print("KERNEL_OK")
</pallas_src>

<mosaic_0001>
module attributes {stable_mosaic.version = 11 : i64} {
  func.func @dan_kernel(%arg0: i32, %arg1: memref<8x8xi32, #tpu.memory_space<vmem>>, %arg2: memref<8x1xf32, #tpu.memory_space<vmem>>, %arg3: memref<128x128xf32, #tpu.memory_space<vmem>>, %arg4: memref<128x128xf32, #tpu.memory_space<vmem>>, %arg5: memref<1x128xf32, #tpu.memory_space<vmem>>, %arg6: memref<128x128xf32, #tpu.memory_space<vmem>>, %arg7: memref<1x128xf32, #tpu.memory_space<vmem>>, %arg8: memref<8x128xf32, #tpu.memory_space<vmem>>) attributes {dimension_semantics = [#tpu.dimension_semantics<parallel>], iteration_bounds = array<i64: 1>, scalar_prefetch = 0 : i64, scratch_operands = 0 : i64, tpu.core_type = #tpu.core_type<tc>, window_params = [{transform_indices = @transform_0, window_bounds = array<i64: 8, 8>}, {transform_indices = @transform_1, window_bounds = array<i64: 8, 1>}, {pipeline_mode = #tpu.pipeline_mode<synchronous>, transform_indices = @transform_2, window_bounds = array<i64: 128, 128>}, {pipeline_mode = #tpu.pipeline_mode<synchronous>, transform_indices = @transform_3, window_bounds = array<i64: 128, 128>}, {pipeline_mode = #tpu.pipeline_mode<synchronous>, transform_indices = @transform_4, window_bounds = array<i64: 1, 128>}, {pipeline_mode = #tpu.pipeline_mode<synchronous>, transform_indices = @transform_5, window_bounds = array<i64: 128, 128>}, {pipeline_mode = #tpu.pipeline_mode<synchronous>, transform_indices = @transform_6, window_bounds = array<i64: 1, 128>}, {transform_indices = @transform_7, window_bounds = array<i64: 8, 128>}]} {
    %c0 = arith.constant 0 : index
    %c0_0 = arith.constant 0 : index
    %0 = vector.load %arg1[%c0, %c0_0] : memref<8x8xi32, #tpu.memory_space<vmem>>, vector<8x8xi32>
    %1 = tpu.iota {dimensions = array<i32: 2>} : vector<8x8x128xi32>
    %2 = vector.shape_cast %0 : vector<8x8xi32> to vector<8x8x1xi32>
    %3 = vector.broadcast %2 : vector<8x8x1xi32> to vector<8x8x128xi32>
    %4 = arith.cmpi eq, %3, %1 : vector<8x8x128xi32>
    %5 = arith.extui %4 : vector<8x8x128xi1> to vector<8x8x128xi32>
    %6 = arith.sitofp %5 : vector<8x8x128xi32> to vector<8x8x128xf32>
    %cst = arith.constant dense<0.000000e+00> : vector<8x128xf32>
    %7 = vector.multi_reduction <add>, %6, %cst [1] : vector<8x8x128xf32> to vector<8x128xf32>
    %c0_1 = arith.constant 0 : index
    %c0_2 = arith.constant 0 : index
    %8 = vector.load %arg3[%c0_1, %c0_2] : memref<128x128xf32, #tpu.memory_space<vmem>>, vector<128x128xf32>
    %cst_3 = arith.constant dense<0.000000e+00> : vector<8x128xf32>
    %9 = tpu.matmul %7, %8, %cst_3 {dimension_numbers = #tpu.dot_dimension_numbers<[1], [0], [0], [1], [0, 0, 1, 1], [], []>} : vector<8x128xf32>, vector<128x128xf32>, vector<8x128xf32> -> vector<8x128xf32>
    %c0_4 = arith.constant 0 : index
    %c0_5 = arith.constant 0 : index
    %10 = vector.load %arg2[%c0_4, %c0_5] : memref<8x1xf32, #tpu.memory_space<vmem>>, vector<8x1xf32>
    %11 = vector.broadcast %10 : vector<8x1xf32> to vector<8x128xf32>
    %12 = arith.mulf %9, %11 : vector<8x128xf32>
    %c0_6 = arith.constant 0 : index
    %c0_7 = arith.constant 0 : index
    %13 = vector.load %arg4[%c0_6, %c0_7] : memref<128x128xf32, #tpu.memory_space<vmem>>, vector<128x128xf32>
    %cst_8 = arith.constant dense<0.000000e+00> : vector<8x128xf32>
    %14 = tpu.matmul %12, %13, %cst_8 {dimension_numbers = #tpu.dot_dimension_numbers<[1], [0], [0], [1], [0, 0, 1, 1], [], []>} : vector<8x128xf32>, vector<128x128xf32>, vector<8x128xf32> -> vector<8x128xf32>
    %c0_9 = arith.constant 0 : index
    %c0_10 = arith.constant 0 : index
    %15 = vector.load %arg5[%c0_9, %c0_10] : memref<1x128xf32, #tpu.memory_space<vmem>>, vector<1x128xf32>
    %16 = vector.broadcast %15 : vector<1x128xf32> to vector<8x128xf32>
    %17 = arith.addf %14, %16 : vector<8x128xf32>
    %cst_11 = arith.constant 0.000000e+00 : f32
    %18 = vector.broadcast %cst_11 : f32 to vector<8x128xf32>
    %19 = arith.maximumf %17, %18 : vector<8x128xf32>
    %c0_12 = arith.constant 0 : index
    %c0_13 = arith.constant 0 : index
    %20 = vector.load %arg6[%c0_12, %c0_13] : memref<128x128xf32, #tpu.memory_space<vmem>>, vector<128x128xf32>
    %cst_14 = arith.constant dense<0.000000e+00> : vector<8x128xf32>
    %21 = tpu.matmul %19, %20, %cst_14 {dimension_numbers = #tpu.dot_dimension_numbers<[1], [0], [0], [1], [0, 0, 1, 1], [], []>} : vector<8x128xf32>, vector<128x128xf32>, vector<8x128xf32> -> vector<8x128xf32>
    %c0_15 = arith.constant 0 : index
    %c0_16 = arith.constant 0 : index
    %22 = vector.load %arg7[%c0_15, %c0_16] : memref<1x128xf32, #tpu.memory_space<vmem>>, vector<1x128xf32>
    %23 = vector.broadcast %22 : vector<1x128xf32> to vector<8x128xf32>
    %24 = arith.addf %21, %23 : vector<8x128xf32>
    %c0_17 = arith.constant 0 : index
    %c0_18 = arith.constant 0 : index
    %25 = vector.load %arg8[%c0_17, %c0_18] : memref<8x128xf32, #tpu.memory_space<vmem>>, vector<8x128xf32>
    tpu.vector_store %arg8[%c0_17, %c0_18], %24 {strides = array<i32>} : memref<8x128xf32, #tpu.memory_space<vmem>>, vector<8x128xf32>,
    return
  }
  func.func @transform_0(%arg0: i32) -> (i32, i32) {
    %c0_i32 = arith.constant 0 : i32
    %c0_i32_0 = arith.constant 0 : i32
    return %arg0, %c0_i32 : i32, i32
  }
  func.func @transform_1(%arg0: i32) -> (i32, i32) {
    %c0_i32 = arith.constant 0 : i32
    %c0_i32_0 = arith.constant 0 : i32
    return %arg0, %c0_i32 : i32, i32
  }
  func.func @transform_2(%arg0: i32) -> (i32, i32) {
    %c0_i32 = arith.constant 0 : i32
    %c0_i32_0 = arith.constant 0 : i32
    %c0_i32_1 = arith.constant 0 : i32
    return %c0_i32, %c0_i32_0 : i32, i32
  }
  func.func @transform_3(%arg0: i32) -> (i32, i32) {
    %c0_i32 = arith.constant 0 : i32
    %c0_i32_0 = arith.constant 0 : i32
    %c0_i32_1 = arith.constant 0 : i32
    return %c0_i32, %c0_i32_0 : i32, i32
  }
  func.func @transform_4(%arg0: i32) -> (i32, i32) {
    %c0_i32 = arith.constant 0 : i32
    %c0_i32_0 = arith.constant 0 : i32
    %c0_i32_1 = arith.constant 0 : i32
    return %c0_i32, %c0_i32_0 : i32, i32
  }
  func.func @transform_5(%arg0: i32) -> (i32, i32) {
    %c0_i32 = arith.constant 0 : i32
    %c0_i32_0 = arith.constant 0 : i32
    %c0_i32_1 = arith.constant 0 : i32
    return %c0_i32, %c0_i32_0 : i32, i32
  }
  func.func @transform_6(%arg0: i32) -> (i32, i32) {
    %c0_i32 = arith.constant 0 : i32
    %c0_i32_0 = arith.constant 0 : i32
    %c0_i32_1 = arith.constant 0 : i32
    return %c0_i32, %c0_i32_0 : i32, i32
  }
  func.func @transform_7(%arg0: i32) -> (i32, i32) {
    %c0_i32 = arith.constant 0 : i32
    %c0_i32_0 = arith.constant 0 : i32
    return %arg0, %c0_i32 : i32, i32
  }
}

</mosaic_0001>

<llo_original>
// kernel: tpu_custom_call.1
$region0: #{tpu_custom_call.1}
  #allocation0 [shape = 'u32[]', space=smem, size = 0x4, offset = 0x4, fixed_abs, tag = 'smem constant byte address 0x4 - core index']
  #allocation1 [shape = 'u32[144,128]{1,0:T(1,128)}', space=vmem, size = 0x12000, scoped, tag = 'internal scratch']
  %s0 = inlined_call_operand.vmem [shape: s32[8,8], index: 0, kind: input, shape index: {}]
  %s1 = inlined_call_operand.vmem [shape: f32[8,1], index: 1, kind: input, shape index: {}]
  %s2 = inlined_call_operand.hbm [shape: f32[128,128], index: 2, kind: input, shape index: {}]
  %s3 = inlined_call_operand.hbm [shape: f32[128,128], index: 3, kind: input, shape index: {}]
  %s4 = inlined_call_operand.vmem [shape: f32[1,128], index: 4, kind: input, shape index: {}]
  %s5 = inlined_call_operand.hbm [shape: f32[128,128], index: 5, kind: input, shape index: {}]
  %s6 = inlined_call_operand.vmem [shape: f32[1,128], index: 6, kind: input, shape index: {}]
  %s7 = inlined_call_operand.hbm [shape: f32[8,128], index: 7, kind: output, shape index: {}]
  %s8 = sld [smem:[#allocation0]]
  $region50: #{tpu_custom_call.1} parent=0
    _
  %s10 = ssub.s32 1, %s8
  %s11 = scalar_select 0, %s10, %s8
  $region1: #{tpu_custom_call.1} parent=0
    #allocation2 [shape = 'u8[65536]{0}', space=vmem, size = 0x10000, scoped, tag = 'input window, operand 2, single buffered']
    #allocation3 [shape = 's32[1]{0}', space=sflag, size = 0x4, scoped, tag = 'scoped memory for tpu_custom_call.1']
    #allocation4 [shape = 's32[1]{0}', space=sflag, size = 0x4, scoped, tag = 'scoped memory for tpu_custom_call.1']
    #allocation5 [shape = 'u8[65536]{0}', space=vmem, size = 0x10000, scoped, tag = 'input window, operand 3, single buffered']
    #allocation6 [shape = 's32[1]{0}', space=sflag, size = 0x4, scoped, tag = 'scoped memory for tpu_custom_call.1']
    #allocation7 [shape = 'u8[65536]{0}', space=vmem, size = 0x10000, scoped, tag = 'input window, operand 5, single buffered']
    #allocation8 [shape = 'u8[4096]{0}', space=vmem, size = 0x1000, scoped, tag = 'output window, operand 0, single buffered']
    %12 = vsyncpa [#allocation3], 0
    %13 = vsyncpa [#allocation6], 0
    %14 = vsyncpa [#allocation4], 0
    // Predicated region
    $region2: #{tpu_custom_call.1} parent=1 // pred_check
      _
    $region3: #{tpu_custom_call.1} parent=1 // pred_check_branch
      %16 = sbr.rel (0) target = $region5
    $region4: #{tpu_custom_call.1} parent=1 // pred_region
      _
    $region5: #{tpu_custom_call.1} parent=1 // pred_fallthru
      _
    // Predicated region
    $region6: #{tpu_custom_call.1} parent=1 // pred_check
      _
    $region7: #{tpu_custom_call.1} parent=1 // pred_check_branch
      %18 = sbr.rel (0) target = $region9
    $region8: #{tpu_custom_call.1} parent=1 // pred_region
      _
    $region9: #{tpu_custom_call.1} parent=1 // pred_fallthru
      _
    // Predicated region
    $region10: #{tpu_custom_call.1} parent=1 // pred_check
      _
    $region11: #{tpu_custom_call.1} parent=1 // pred_check_branch
      %20 = sbr.rel (0) target = $region13
    $region12: #{tpu_custom_call.1} parent=1 // pred_region
      %s22 = ssub.s32 2048, 2048
      %23 = vsyncadd [#allocation3], %s22
      %s24 = sshll.u32 [#allocation2], 4
      %s25 = int_to_ptr.vmem [resolvable:$true] %s24
      %30 = dma.hbm_to_vmem [thread:$0]  %s2, 2048, %s25, [#allocation3], 128, 128, 8
    $region13: #{tpu_custom_call.1} parent=1 // pred_fallthru
      _
    // Predicated region
    $region14: #{tpu_custom_call.1} parent=1 // pred_check
      _
    $region15: #{tpu_custom_call.1} parent=1 // pred_check_branch
      %32 = sbr.rel (0) target = $region17
    $region16: #{tpu_custom_call.1} parent=1 // pred_region
      %s34 = ssub.s32 2048, 2048
      %35 = vsyncadd [#allocation6], %s34
      %s36 = sshll.u32 [#allocation5], 4
      %s37 = int_to_ptr.vmem [resolvable:$true] %s36
      %42 = dma.hbm_to_vmem [thread:$0]  %s3, 2048, %s37, [#allocation6], 128, 128, 8
    $region17: #{tpu_custom_call.1} parent=1 // pred_fallthru
      _
    // Predicated region
    $region18: #{tpu_custom_call.1} parent=1 // pred_check
      _
    $region19: #{tpu_custom_call.1} parent=1 // pred_check_branch
      %44 = sbr.rel (0) target = $region21
    $region20: #{tpu_custom_call.1} parent=1 // pred_region
      _
    $region21: #{tpu_custom_call.1} parent=1 // pred_fallthru
      _
    // Predicated region
    $region22: #{tpu_custom_call.1} parent=1 // pred_check
      _
    $region23: #{tpu_custom_call.1} parent=1 // pred_check_branch
      %46 = sbr.rel (0) target = $region25
    $region24: #{tpu_custom_call.1} parent=1 // pred_region
      %s48 = ssub.s32 2048, 2048
      %49 = vsyncadd [#allocation6], %s48
      %s50 = sshll.u32 [#allocation7], 4
      %s51 = int_to_ptr.vmem [resolvable:$true] %s50
      %56 = dma.hbm_to_vmem [thread:$0]  %s5, 2048, %s51, [#allocation6], 128, 128, 8
    $region25: #{tpu_custom_call.1} parent=1 // pred_fallthru
      _
    // Predicated region
    $region26: #{tpu_custom_call.1} parent=1 // pred_check
      _
    $region27: #{tpu_custom_call.1} parent=1 // pred_check_branch
      %58 = sbr.rel (0) target = $region29
    $region28: #{tpu_custom_call.1} parent=1 // pred_region
      _
    $region29: #{tpu_custom_call.1} parent=1 // pred_fallthru
      _
    // Predicated region
    $region30: #{tpu_custom_call.1} parent=1 // pred_check
      _
    $region31: #{tpu_custom_call.1} parent=1 // pred_check_branch
      %60 = sbr.rel (0) target = $region33
    $region32: #{tpu_custom_call.1} parent=1 // pred_region
      %61 = dma.done [#allocation3], 2048
    $region33: #{tpu_custom_call.1} parent=1 // pred_fallthru
      _
    // Predicated region
    $region34: #{tpu_custom_call.1} parent=1 // pred_check
      _
    $region35: #{tpu_custom_call.1} parent=1 // pred_check_branch
      %63 = sbr.rel (0) target = $region37
    $region36: #{tpu_custom_call.1} parent=1 // pred_region
      %64 = dma.done [#allocation6], 2048
    $region37: #{tpu_custom_call.1} parent=1 // pred_fallthru
      _
    // Predicated region
    $region38: #{tpu_custom_call.1} parent=1 // pred_check
      _
    $region39: #{tpu_custom_call.1} parent=1 // pred_check_branch
      %66 = sbr.rel (0) target = $region41
    $region40: #{tpu_custom_call.1} parent=1 // pred_region
      %67 = dma.done [#allocation6], 2048
    $region41: #{tpu_custom_call.1} parent=1 // pred_fallthru
      _
    %v68 = vld [vmem:[%s0] sm:$0xff]
    %v69 = vlaneseq
    %v70 = vand.u32 %v69, 127
    %v71 = vlaneseq
    %v72 = vshrl.u32 %v71, 7
    %v73 = vsub.s32 0, %v72
    %v74 = vrot.slane %v68, %v73
    %76 = vbcast.lane.b32.xlu0 %v74, 256
    %v77 = vpop.permute.xlu0 %76
    %v78 = vlaneseq
    %v79 = vshrl.u32 %v78, 7
    %v80 = vsub.s32 1, %v79
    %v81 = vrot.slane %v68, %v80
    %83 = vbcast.lane.b32.xlu0 %v81, 256
    %v84 = vpop.permute.xlu0 %83
    %v85 = vlaneseq
    %v86 = vshrl.u32 %v85, 7
    %v87 = vsub.s32 2, %v86
    %v88 = vrot.slane %v68, %v87
    %90 = vbcast.lane.b32.xlu0 %v88, 256
    %v91 = vpop.permute.xlu0 %90
    %v92 = vlaneseq
    %v93 = vshrl.u32 %v92, 7
    %v94 = vsub.s32 3, %v93
    %v95 = vrot.slane %v68, %v94
    %97 = vbcast.lane.b32.xlu0 %v95, 256
    %v98 = vpop.permute.xlu0 %97
    %v99 = vlaneseq
    %v100 = vshrl.u32 %v99, 7
    %v101 = vsub.s32 4, %v100
    %v102 = vrot.slane %v68, %v101
    %104 = vbcast.lane.b32.xlu0 %v102, 256
    %v105 = vpop.permute.xlu0 %104
    %v106 = vlaneseq
    %v107 = vshrl.u32 %v106, 7
    %v108 = vsub.s32 5, %v107
    %v109 = vrot.slane %v68, %v108
    %111 = vbcast.lane.b32.xlu0 %v109, 256
    %v112 = vpop.permute.xlu0 %111
    %v113 = vlaneseq
    %v114 = vshrl.u32 %v113, 7
    %v115 = vsub.s32 6, %v114
    %v116 = vrot.slane %v68, %v115
    %118 = vbcast.lane.b32.xlu0 %v116, 256
    %v119 = vpop.permute.xlu0 %118
    %v120 = vlaneseq
    %v121 = vshrl.u32 %v120, 7
    %v122 = vsub.s32 7, %v121
    %v123 = vrot.slane %v68, %v122
    %125 = vbcast.lane.b32.xlu0 %v123, 256
    %v126 = vpop.permute.xlu0 %125
    %vm127 = vcmp.eq.s32.totalorder %v77, %v70
    %vm128 = vcmp.eq.s32.totalorder %v84, %v70
    %vm129 = vcmp.eq.s32.totalorder %v91, %v70
    %vm130 = vcmp.eq.s32.totalorder %v98, %v70
    %vm131 = vcmp.eq.s32.totalorder %v105, %v70
    %vm132 = vcmp.eq.s32.totalorder %v112, %v70
    %vm133 = vcmp.eq.s32.totalorder %v119, %v70
    %vm134 = vcmp.eq.s32.totalorder %v126, %v70
    %v135 = vsel %vm127, 1, 0
    %v136 = vsel %vm128, 1, 0
    %v137 = vsel %vm129, 1, 0
    %v138 = vsel %vm130, 1, 0
    %v139 = vsel %vm131, 1, 0
    %v140 = vsel %vm132, 1, 0
    %v141 = vsel %vm133, 1, 0
    %v142 = vsel %vm134, 1, 0
    %v143 = vcvt.s32.f32 %v135
    %v144 = vcvt.s32.f32 %v136
    %v145 = vcvt.s32.f32 %v137
    %v146 = vcvt.s32.f32 %v138
    %v147 = vcvt.s32.f32 %v139
    %v148 = vcvt.s32.f32 %v140
    %v149 = vcvt.s32.f32 %v141
    %v150 = vcvt.s32.f32 %v142
    %v151 = vrot.slane %v143, 4
    %v152 = vadd.f32 %v143, %v151
    %v153 = vrot.slane %v152, 2
    %v154 = vadd.f32 %v152, %v153
    %v155 = vrot.slane %v154, 1
    %v156 = vadd.f32 %v154, %v155
    %v157 = vrot.slane %v144, 4
    %v158 = vadd.f32 %v144, %v157
    %v159 = vrot.slane %v158, 2
    %v160 = vadd.f32 %v158, %v159
    %v161 = vrot.slane %v160, 1
    %v162 = vadd.f32 %v160, %v161
    %v163 = vrot.slane %v145, 4
    %v164 = vadd.f32 %v145, %v163
    %v165 = vrot.slane %v164, 2
    %v166 = vadd.f32 %v164, %v165
    %v167 = vrot.slane %v166, 1
    %v168 = vadd.f32 %v166, %v167
    %v169 = vrot.slane %v146, 4
    %v170 = vadd.f32 %v146, %v169
    %v171 = vrot.slane %v170, 2
    %v172 = vadd.f32 %v170, %v171
    %v173 = vrot.slane %v172, 1
    %v174 = vadd.f32 %v172, %v173
    %v175 = vrot.slane %v147, 4
    %v176 = vadd.f32 %v147, %v175
    %v177 = vrot.slane %v176, 2
    %v178 = vadd.f32 %v176, %v177
    %v179 = vrot.slane %v178, 1
    %v180 = vadd.f32 %v178, %v179
    %v181 = vrot.slane %v148, 4
    %v182 = vadd.f32 %v148, %v181
    %v183 = vrot.slane %v182, 2
    %v184 = vadd.f32 %v182, %v183
    %v185 = vrot.slane %v184, 1
    %v186 = vadd.f32 %v184, %v185
    %v187 = vrot.slane %v149, 4
    %v188 = vadd.f32 %v149, %v187
    %v189 = vrot.slane %v188, 2
    %v190 = vadd.f32 %v188, %v189
    %v191 = vrot.slane %v190, 1
    %v192 = vadd.f32 %v190, %v191
    %v193 = vrot.slane %v150, 4
    %v194 = vadd.f32 %v150, %v193
    %v195 = vrot.slane %v194, 2
    %v196 = vadd.f32 %v194, %v195
    %v197 = vrot.slane %v196, 1
    %v198 = vadd.f32 %v196, %v197
    %v199 = vld [vmem:[#allocation2] sm:$0xff]
    %v200 = vld [vmem:[#allocation2 + $0x8] sm:$0xff]
    %v201 = vld [vmem:[#allocation2 + $0x10] sm:$0xff]
    %v202 = vld [vmem:[#allocation2 + $0x18] sm:$0xff]
    %v203 = vld [vmem:[#allocation2 + $0x20] sm:$0xff]
    %v204 = vld [vmem:[#allocation2 + $0x28] sm:$0xff]
    %v205 = vld [vmem:[#allocation2 + $0x30] sm:$0xff]
    %v206 = vld [vmem:[#allocation2 + $0x38] sm:$0xff]
    %v207 = vld [vmem:[#allocation2 + $0x40] sm:$0xff]
    %v208 = vld [vmem:[#allocation2 + $0x48] sm:$0xff]
    %v209 = vld [vmem:[#allocation2 + $0x50] sm:$0xff]
    %v210 = vld [vmem:[#allocation2 + $0x58] sm:$0xff]
    %v211 = vld [vmem:[#allocation2 + $0x60] sm:$0xff]
    %v212 = vld [vmem:[#allocation2 + $0x68] sm:$0xff]
    %v213 = vld [vmem:[#allocation2 + $0x70] sm:$0xff]
    %v214 = vld [vmem:[#allocation2 + $0x78] sm:$0xff]
    %vm223 = vcmask 1041409
    %v224 = vsel %vm223, %v162, %v156
    %vm225 = vcmask 1042434
    %v226 = vsel %vm225, %v168, %v224
    %vm227 = vcmask 1043459
    %v228 = vsel %vm227, %v174, %v226
    %vm229 = vcmask 1044484
    %v230 = vsel %vm229, %v180, %v228
    %vm231 = vcmask 1045509
    %v232 = vsel %vm231, %v186, %v230
    %vm233 = vcmask 1046534
    %v234 = vsel %vm233, %v192, %v232
    %vm235 = vcmask 1047559
    %v236 = vsel %vm235, %v198, %v234
    %238 = vmatprep.subr.mxu0 0.0
    %239 = vmatpush1.msra.mxu0 %v199
    %240 = vmatprep.subr.mxu0 0.0
    %241 = vmatpush1.msra.mxu0 %v200
    %242 = vmatprep.subr.mxu0 0.0
    %243 = vmatpush1.msra.mxu0 %v201
    %244 = vmatprep.subr.mxu0 0.0
    %245 = vmatpush1.msra.mxu0 %v202
    %246 = vmatprep.subr.mxu0 0.0
    %247 = vmatpush1.msra.mxu0 %v203
    %248 = vmatprep.subr.mxu0 0.0
    %249 = vmatpush1.msra.mxu0 %v204
    %250 = vmatprep.subr.mxu0 0.0
    %251 = vmatpush1.msra.mxu0 %v205
    %252 = vmatprep.subr.mxu0 0.0
    %253 = vmatpush1.msra.mxu0 %v206
    %254 = vmatprep.subr.mxu0 0.0
    %255 = vmatpush1.msra.mxu0 %v207
    %256 = vmatprep.subr.mxu0 0.0
    %257 = vmatpush1.msra.mxu0 %v208
    %258 = vmatprep.subr.mxu0 0.0
    %259 = vmatpush1.msra.mxu0 %v209
    %260 = vmatprep.subr.mxu0 0.0
    %261 = vmatpush1.msra.mxu0 %v210
    %262 = vmatprep.subr.mxu0 0.0
    %263 = vmatpush1.msra.mxu0 %v211
    %264 = vmatprep.subr.mxu0 0.0
    %265 = vmatpush1.msra.mxu0 %v212
    %266 = vmatprep.subr.mxu0 0.0
    %267 = vmatpush1.msra.mxu0 %v213
    %268 = vmatprep.subr.mxu0 0.0
    %269 = vmatpush1.msra.mxu0 %v214
    %270 = vmatprep.subr.mxu0 0.0
    %271 = vmatpush1.msra.mxu0 0.0
    %272 = vmatprep.subr.mxu0 0.0
    %273 = vmatpush1.msra.mxu0 0.0
    %274 = vmatprep.subr.mxu0 0.0
    %275 = vmatpush1.msra.mxu0 0.0
    %276 = vmatprep.subr.mxu0 0.0
    %277 = vmatpush1.msra.mxu0 0.0
    %278 = vmatprep.subr.mxu0 0.0
    %279 = vmatpush1.msra.mxu0 0.0
    %280 = vmatprep.subr.mxu0 0.0
    %281 = vmatpush1.msra.mxu0 0.0
    %282 = vmatprep.subr.mxu0 0.0
    %283 = vmatpush1.msra.mxu0 0.0
    %284 = vmatprep.subr.mxu0 0.0
    %285 = vmatpush1.msra.mxu0 0.0
    %286 = vmatprep.subr.mxu0 0.0
    %287 = vmatpush1.msra.mxu0 0.0
    %288 = vmatprep.subr.mxu0 0.0
    %289 = vmatpush1.msra.mxu0 0.0
    %290 = vmatprep.subr.mxu0 0.0
    %291 = vmatpush1.msra.mxu0 0.0
    %292 = vmatprep.subr.mxu0 0.0
    %293 = vmatpush1.msra.mxu0 0.0
    %294 = vmatprep.subr.mxu0 0.0
    %295 = vmatpush1.msra.mxu0 0.0
    %296 = vmatprep.subr.mxu0 0.0
    %297 = vmatpush1.msra.mxu0 0.0
    %298 = vmatprep.subr.mxu0 0.0
    %299 = vmatpush1.msra.mxu0 0.0
    %300 = vmatprep.subr.mxu0 0.0
    %301 = vmatpush1.msra.mxu0 0.0
    %302 = vmatprep.mubr.f32.mxu0 0.0
    %303 = vmatmul.mubr.f32.gmra.mrb[0].mxu0 %v236
    %v304 = vpop.f32.mrb[0].mxu0
    %v305 = vadd.f32 0.0, %v304
    %v306 = vpop.f32.mrb[0].mxu0
    %307 = vdwg.mxu0
    %v308 = vld [vmem:[%s1] sm:$0xff]
    %310 = vset.pattern.permute.xlu0 0
    %311 = vperm.xlu0 %310, %v308
    %v312 = vpop.permute.xlu0 %311
    %v314 = vmul.f32 %v305, %v312
    %v315 = vld [vmem:[#allocation5] sm:$0xff]
    %v316 = vld [vmem:[#allocation5 + $0x8] sm:$0xff]
    %v317 = vld [vmem:[#allocation5 + $0x10] sm:$0xff]
    %v318 = vld [vmem:[#allocation5 + $0x18] sm:$0xff]
    %v319 = vld [vmem:[#allocation5 + $0x20] sm:$0xff]
    %v320 = vld [vmem:[#allocation5 + $0x28] sm:$0xff]
    %v321 = vld [vmem:[#allocation5 + $0x30] sm:$0xff]
    %v322 = vld [vmem:[#allocation5 + $0x38] sm:$0xff]
    %v323 = vld [vmem:[#allocation5 + $0x40] sm:$0xff]
    %v324 = vld [vmem:[#allocation5 + $0x48] sm:$0xff]
    %v325 = vld [vmem:[#allocation5 + $0x50] sm:$0xff]
    %v326 = vld [vmem:[#allocation5 + $0x58] sm:$0xff]
    %v327 = vld [vmem:[#allocation5 + $0x60] sm:$0xff]
    %v328 = vld [vmem:[#allocation5 + $0x68] sm:$0xff]
    %v329 = vld [vmem:[#allocation5 + $0x70] sm:$0xff]
    %v330 = vld [vmem:[#allocation5 + $0x78] sm:$0xff]
    %v331 = vld [vmem:[%s4] sm:$0x1]
    %v333 = vlaneseq
    %v334 = vshrl.u32 %v333, 7
    %v335 = vsub.s32 0, %v334
    %v336 = vrot.slane %v331, %v335
    %338 = vmatprep.subr.mxu0 0.0
    %339 = vmatpush1.msra.mxu0 %v315
    %340 = vmatprep.subr.mxu0 0.0
    %341 = vmatpush1.msra.mxu0 %v316
    %342 = vmatprep.subr.mxu0 0.0
    %343 = vmatpush1.msra.mxu0 %v317
    %344 = vmatprep.subr.mxu0 0.0
    %345 = vmatpush1.msra.mxu0 %v318
    %346 = vmatprep.subr.mxu0 0.0
    %347 = vmatpush1.msra.mxu0 %v319
    %348 = vmatprep.subr.mxu0 0.0
    %349 = vmatpush1.msra.mxu0 %v320
    %350 = vmatprep.subr.mxu0 0.0
    %351 = vmatpush1.msra.mxu0 %v321
    %352 = vmatprep.subr.mxu0 0.0
    %353 = vmatpush1.msra.mxu0 %v322
    %354 = vmatprep.subr.mxu0 0.0
    %355 = vmatpush1.msra.mxu0 %v323
    %356 = vmatprep.subr.mxu0 0.0
    %357 = vmatpush1.msra.mxu0 %v324
    %358 = vmatprep.subr.mxu0 0.0
    %359 = vmatpush1.msra.mxu0 %v325
    %360 = vmatprep.subr.mxu0 0.0
    %361 = vmatpush1.msra.mxu0 %v326
    %362 = vmatprep.subr.mxu0 0.0
    %363 = vmatpush1.msra.mxu0 %v327
    %364 = vmatprep.subr.mxu0 0.0
    %365 = vmatpush1.msra.mxu0 %v328
    %366 = vmatprep.subr.mxu0 0.0
    %367 = vmatpush1.msra.mxu0 %v329
    %368 = vmatprep.subr.mxu0 0.0
    %369 = vmatpush1.msra.mxu0 %v330
    %370 = vmatprep.subr.mxu0 0.0
    %371 = vmatpush1.msra.mxu0 0.0
    %372 = vmatprep.subr.mxu0 0.0
    %373 = vmatpush1.msra.mxu0 0.0
    %374 = vmatprep.subr.mxu0 0.0
    %375 = vmatpush1.msra.mxu0 0.0
    %376 = vmatprep.subr.mxu0 0.0
    %377 = vmatpush1.msra.mxu0 0.0
    %378 = vmatprep.subr.mxu0 0.0
    %379 = vmatpush1.msra.mxu0 0.0
    %380 = vmatprep.subr.mxu0 0.0
    %381 = vmatpush1.msra.mxu0 0.0
    %382 = vmatprep.subr.mxu0 0.0
    %383 = vmatpush1.msra.mxu0 0.0
    %384 = vmatprep.subr.mxu0 0.0
    %385 = vmatpush1.msra.mxu0 0.0
    %386 = vmatprep.subr.mxu0 0.0
    %387 = vmatpush1.msra.mxu0 0.0
    %388 = vmatprep.subr.mxu0 0.0
    %389 = vmatpush1.msra.mxu0 0.0
    %390 = vmatprep.subr.mxu0 0.0
    %391 = vmatpush1.msra.mxu0 0.0
    %392 = vmatprep.subr.mxu0 0.0
    %393 = vmatpush1.msra.mxu0 0.0
    %394 = vmatprep.subr.mxu0 0.0
    %395 = vmatpush1.msra.mxu0 0.0
    %396 = vmatprep.subr.mxu0 0.0
    %397 = vmatpush1.msra.mxu0 0.0
    %398 = vmatprep.subr.mxu0 0.0
    %399 = vmatpush1.msra.mxu0 0.0
    %400 = vmatprep.subr.mxu0 0.0
    %401 = vmatpush1.msra.mxu0 0.0
    %402 = vmatprep.mubr.f32.mxu0 0.0
    %403 = vmatmul.mubr.f32.gmra.mrb[0].mxu0 %v314
    %v404 = vpop.f32.mrb[0].mxu0
    %v405 = vadd.f32 %v336, %v404
    %v406 = vpop.f32.mrb[0].mxu0
    %407 = vdwg.mxu0
    %v408 = vmax.f32 %v405, 0.0
    %v409 = vld [vmem:[#allocation7] sm:$0xff]
    %v410 = vld [vmem:[#allocation7 + $0x8] sm:$0xff]
    %v411 = vld [vmem:[#allocation7 + $0x10] sm:$0xff]
    %v412 = vld [vmem:[#allocation7 + $0x18] sm:$0xff]
    %v413 = vld [vmem:[#allocation7 + $0x20] sm:$0xff]
    %v414 = vld [vmem:[#allocation7 + $0x28] sm:$0xff]
    %v415 = vld [vmem:[#allocation7 + $0x30] sm:$0xff]
    %v416 = vld [vmem:[#allocation7 + $0x38] sm:$0xff]
    %v417 = vld [vmem:[#allocation7 + $0x40] sm:$0xff]
    %v418 = vld [vmem:[#allocation7 + $0x48] sm:$0xff]
    %v419 = vld [vmem:[#allocation7 + $0x50] sm:$0xff]
    %v420 = vld [vmem:[#allocation7 + $0x58] sm:$0xff]
    %v421 = vld [vmem:[#allocation7 + $0x60] sm:$0xff]
    %v422 = vld [vmem:[#allocation7 + $0x68] sm:$0xff]
    %v423 = vld [vmem:[#allocation7 + $0x70] sm:$0xff]
    %v424 = vld [vmem:[#allocation7 + $0x78] sm:$0xff]
    %v425 = vld [vmem:[%s6] sm:$0x1]
    %v427 = vlaneseq
    %v428 = vshrl.u32 %v427, 7
    %v429 = vsub.s32 0, %v428
    %v430 = vrot.slane %v425, %v429
    %432 = vmatprep.subr.mxu0 0.0
    %433 = vmatpush1.msra.mxu0 %v409
    %434 = vmatprep.subr.mxu0 0.0
    %435 = vmatpush1.msra.mxu0 %v410
    %436 = vmatprep.subr.mxu0 0.0
    %437 = vmatpush1.msra.mxu0 %v411
    %438 = vmatprep.subr.mxu0 0.0
    %439 = vmatpush1.msra.mxu0 %v412
    %440 = vmatprep.subr.mxu0 0.0
    %441 = vmatpush1.msra.mxu0 %v413
    %442 = vmatprep.subr.mxu0 0.0
    %443 = vmatpush1.msra.mxu0 %v414
    %444 = vmatprep.subr.mxu0 0.0
    %445 = vmatpush1.msra.mxu0 %v415
    %446 = vmatprep.subr.mxu0 0.0
    %447 = vmatpush1.msra.mxu0 %v416
    %448 = vmatprep.subr.mxu0 0.0
    %449 = vmatpush1.msra.mxu0 %v417
    %450 = vmatprep.subr.mxu0 0.0
    %451 = vmatpush1.msra.mxu0 %v418
    %452 = vmatprep.subr.mxu0 0.0
    %453 = vmatpush1.msra.mxu0 %v419
    %454 = vmatprep.subr.mxu0 0.0
    %455 = vmatpush1.msra.mxu0 %v420
    %456 = vmatprep.subr.mxu0 0.0
    %457 = vmatpush1.msra.mxu0 %v421
    %458 = vmatprep.subr.mxu0 0.0
    %459 = vmatpush1.msra.mxu0 %v422
    %460 = vmatprep.subr.mxu0 0.0
    %461 = vmatpush1.msra.mxu0 %v423
    %462 = vmatprep.subr.mxu0 0.0
    %463 = vmatpush1.msra.mxu0 %v424
    %464 = vmatprep.subr.mxu0 0.0
    %465 = vmatpush1.msra.mxu0 0.0
    %466 = vmatprep.subr.mxu0 0.0
    %467 = vmatpush1.msra.mxu0 0.0
    %468 = vmatprep.subr.mxu0 0.0
    %469 = vmatpush1.msra.mxu0 0.0
    %470 = vmatprep.subr.mxu0 0.0
    %471 = vmatpush1.msra.mxu0 0.0
    %472 = vmatprep.subr.mxu0 0.0
    %473 = vmatpush1.msra.mxu0 0.0
    %474 = vmatprep.subr.mxu0 0.0
    %475 = vmatpush1.msra.mxu0 0.0
    %476 = vmatprep.subr.mxu0 0.0
    %477 = vmatpush1.msra.mxu0 0.0
    %478 = vmatprep.subr.mxu0 0.0
    %479 = vmatpush1.msra.mxu0 0.0
    %480 = vmatprep.subr.mxu0 0.0
    %481 = vmatpush1.msra.mxu0 0.0
    %482 = vmatprep.subr.mxu0 0.0
    %483 = vmatpush1.msra.mxu0 0.0
    %484 = vmatprep.subr.mxu0 0.0
    %485 = vmatpush1.msra.mxu0 0.0
    %486 = vmatprep.subr.mxu0 0.0
    %487 = vmatpush1.msra.mxu0 0.0
    %488 = vmatprep.subr.mxu0 0.0
    %489 = vmatpush1.msra.mxu0 0.0
    %490 = vmatprep.subr.mxu0 0.0
    %491 = vmatpush1.msra.mxu0 0.0
    %492 = vmatprep.subr.mxu0 0.0
    %493 = vmatpush1.msra.mxu0 0.0
    %494 = vmatprep.subr.mxu0 0.0
    %495 = vmatpush1.msra.mxu0 0.0
    %496 = vmatprep.mubr.f32.mxu0 0.0
    %497 = vmatmul.mubr.f32.gmra.mrb[0].mxu0 %v408
    %v498 = vpop.f32.mrb[0].mxu0
    %v499 = vadd.f32 %v430, %v498
    %v500 = vpop.f32.mrb[0].mxu0
    %501 = vdwg.mxu0
    %502 = vst [vmem:[#allocation8] sm:$0xff] %v499
    // Predicated region
    $region42: #{tpu_custom_call.1} parent=1 // pred_check
      _
    $region43: #{tpu_custom_call.1} parent=1 // pred_check_branch
      %504 = sbr.rel (0) target = $region45
    $region44: #{tpu_custom_call.1} parent=1 // pred_region
      %s506 = ssub.s32 128, 128
      %507 = vsyncadd [#allocation4], %s506
      %s509 = sshll.u32 [#allocation8], 4
      %s510 = int_to_ptr.vmem [resolvable:$true] %s509
      %512 = dma.vmem_to_hbm [thread:$0]  %s510, 128, %s7, [#allocation4]
    $region45: #{tpu_custom_call.1} parent=1 // pred_fallthru
      _
    // Predicated region
    $region46: #{tpu_custom_call.1} parent=1 // pred_check
      _
    $region47: #{tpu_custom_call.1} parent=1 // pred_check_branch
      %514 = sbr.rel (0) target = $region49
    $region48: #{tpu_custom_call.1} parent=1 // pred_region
      %515 = dma.done [#allocation4], 128
    $region49: #{tpu_custom_call.1} parent=1 // pred_fallthru
      _
    %516 = vsyncpa [#allocation3], 1
    %517 = vsyncpa [#allocation6], 1
    %518 = vsyncpa [#allocation4], 1

</llo_original>
